<compile_context>
chip_gen: v7x
topology: tpu7x:2x2x1
jax: 0.10.0
libtpu: 0.0.40
codegen_flags: <defaults>
</compile_context>

<pallas_src>
import functools

import jax
import jax.numpy as jnp
from jax.experimental import pallas as pl
from jax.experimental.pallas import tpu as pltpu

EPS = 1e-5


# --------------------------------------------------------------------------
# Pass 0: per-(batch-block, channel) partial sum / sum-of-squares over (BN, M)
# --------------------------------------------------------------------------
def _stats_kernel(x_ref, sum_ref, sq_ref, *, m_total):
    # x_ref:            (BN, C, TM) tile in the *native* dtype
    # sum_ref / sq_ref: (C, SW) f32 lane-wide partial accumulators, resident
    #                   across the spatial grid axis for this batch block.
    m = pl.program_id(1)
    _, _, tm = x_ref.shape
    sw = sum_ref.shape[-1]

    @pl.when(m == 0)
    def _():
        sum_ref[...] = jnp.zeros_like(sum_ref)
        sq_ref[...] = jnp.zeros_like(sq_ref)

    x = x_ref[...].astype(jnp.float32)  # upcast in-register (free for f32)

    def accumulate(xv):
        x2 = xv * xv
        s = sum_ref[...]
        q = sq_ref[...]
        # Lane-chunked accumulation: only VALU adds in the hot loop; the
        # single cross-lane reduction happens in the wrapper fold.
        for k in range(tm // sw):
            sl = slice(k * sw, (k + 1) * sw)
            s = s + jnp.sum(xv[:, :, sl], axis=0)
            q = q + jnp.sum(x2[:, :, sl], axis=0)
        sum_ref[...] = s
        sq_ref[...] = q

    if m_total % tm != 0:  # static: only emit mask code when a tail exists
        nm = pl.num_programs(1)

        @pl.when(m == nm - 1)
        def _():
            # Zero the padded tail lanes (Pallas clips the DMA; the buffer
            # beyond the valid region is undefined).
            lane = jax.lax.broadcasted_iota(jnp.int32, x.shape, 2)
            accumulate(jnp.where(lane < (m_total - m * tm), x, 0.0))

        @pl.when(m < nm - 1)
        def _():
            accumulate(x)
    else:
        accumulate(x)


# --------------------------------------------------------------------------
# Pass 1: out = sigmoid(a[c] * x + b[c]) * x   (native-dtype in / out)
# --------------------------------------------------------------------------
def _apply_kernel(ab_ref, x_ref, out_ref):
    ab = ab_ref[...]                      # (C, 2) packed [a | b], f32
    a = ab[:, 0:1][None, :, :]            # (1, C, 1)
    b = ab[:, 1:2][None, :, :]

    xf = x_ref[...].astype(jnp.float32)   # (BN, C, TM) upcast in-register
    z = a * xf + b
    # sigmoid via EUP exp + EUP approx reciprocal; one Newton step restores
    # ~f32 accuracy while keeping the VALU mostly free (v5e headroom).
    # Clamp z so exp(-z) never overflows to inf (Newton step would NaN).
    zc = jnp.maximum(z, -30.0)
    d = 1.0 + jnp.exp(-zc)
    r = pl.reciprocal(d, approx=True)
    r = r * (2.0 - d * r)                 # Newton refinement
    out_ref[...] = (xf * r).astype(out_ref.dtype)


# --------------------------------------------------------------------------
# Tile-size selection
# --------------------------------------------------------------------------
def _pick_tm(m, cap):
    """Spatial tile: multiple of 128 <= min(cap, m) (prefer exact divisors)."""
    if m < 128:
        return m                          # full (small) dim: legal block
    t = min(cap, (m // 128) * 128)
    # prefer a 128-multiple that divides m exactly (no masked tail), if it is
    # not much smaller than t
    for cand in range(t, max(t // 2, 127), -128):
        if m % cand == 0:
            return cand
    return t


def _pick_bn(n, c, tm, itemsize, budget):
    """Largest divisor of n keeping a (bn, C, tm) tile under `budget` bytes."""
    best = 1
    for cand in range(1, n + 1):
        if n % cand == 0 and cand * c * tm * itemsize <= budget:
            best = cand
    return best


# --------------------------------------------------------------------------
# Wrapper
# --------------------------------------------------------------------------
def channel_att(x_nchw, gamma, beta, *, lane_cap=2048,
                tile_budget_bytes=2 * 1024 * 1024):
    """x_nchw: (N, C, H, W); gamma/beta: (C,). Returns (N, C, H, W)."""
    N, C, H, W = x_nchw.shape
    M = H * W
    x = x_nchw.reshape(N, C, M)           # free reshape, native dtype kept

    itemsize = jnp.dtype(x.dtype).itemsize
    # Cap the lane tile so a single (1, C, tm) tile stays within budget even
    # for large C (keeps pass-1's ~4 VMEM tile buffers well under v7x's
    # 32 MiB scoped default without touching vmem_limit_bytes).
    cap_from_budget = max(128, ((tile_budget_bytes // (C * itemsize)) // 128) * 128)
    tm = _pick_tm(M, min(lane_cap, cap_from_budget))
    n_m = pl.cdiv(M, tm)
    bn = _pick_bn(N, C, tm, itemsize, tile_budget_bytes)
    n_b = N // bn
    sw = 128 if tm % 128 == 0 else tm      # lane width of the stat partials

    # ---- pass 0: per-batch-block, per-channel statistics -------------------
    psum, psq = pl.pallas_call(
        functools.partial(_stats_kernel, m_total=M),
        out_shape=(jax.ShapeDtypeStruct((n_b, C, sw), jnp.float32),
                   jax.ShapeDtypeStruct((n_b, C, sw), jnp.float32)),
        grid=(n_b, n_m),
        in_specs=[pl.BlockSpec((bn, C, tm), lambda n, m: (n, 0, m))],
        out_specs=(pl.BlockSpec((None, C, sw), lambda n, m: (n, 0, 0)),
                   pl.BlockSpec((None, C, sw), lambda n, m: (n, 0, 0))),
        compiler_params=pltpu.CompilerParams(
            dimension_semantics=("parallel", "arbitrary")),
    )(x)

    # ---- fold: O(C) scalar math in the wrapper -----------------------------
    cnt = jnp.float32(N * M)
    s = jnp.sum(psum, axis=(0, 2))                               # (C,)
    q = jnp.sum(psq, axis=(0, 2))                                # (C,)
    mean = s / cnt
    var = jnp.maximum(q / cnt - mean * mean, 0.0)                # biased var
    rstd = jax.lax.rsqrt(var + EPS)
    g = gamma.astype(jnp.float32)
    be = beta.astype(jnp.float32)
    abs_g = jnp.abs(g)
    wbn = abs_g / jnp.sum(abs_g)
    a_c = wbn * g * rstd
    b_c = wbn * (be - g * mean * rstd)
    ab = jnp.stack([a_c, b_c], axis=-1)                          # (C, 2)

    # ---- pass 1: elementwise apply, output aliased onto the input slab -----
    out = pl.pallas_call(
        _apply_kernel,
        out_shape=jax.ShapeDtypeStruct((N, C, M), x.dtype),
        grid=(n_b, n_m),
        in_specs=[pl.BlockSpec((C, 2), lambda n, m: (0, 0)),
                  pl.BlockSpec((bn, C, tm), lambda n, m: (n, 0, m))],
        out_specs=pl.BlockSpec((bn, C, tm), lambda n, m: (n, 0, m)),
        input_output_aliases={1: 0},      # reuse x's (reshaped) buffer
        compiler_params=pltpu.CompilerParams(
            dimension_semantics=("parallel", "parallel")),
    )(ab, x)

    return out.reshape(N, C, H, W)


def channel_att_ref(x, gamma, beta):
    """Pure-JAX reference mirroring the PyTorch forward (f32)."""
    mean = jnp.mean(x, axis=(0, 2, 3), keepdims=True)
    var = jnp.mean((x - mean) ** 2, axis=(0, 2, 3), keepdims=True)
    y = (x - mean) / jnp.sqrt(var + EPS)
    y = y * gamma[None, :, None, None] + beta[None, :, None, None]
    wbn = jnp.abs(gamma) / jnp.sum(jnp.abs(gamma))
    y = y * wbn[None, :, None, None]
    return jax.nn.sigmoid(y) * x


if __name__ == "__main__":
    key = jax.random.PRNGKey(0)
    kx, kg, kb = jax.random.split(key, 3)

    N, C, H, W = 2, 4, 16, 16
    x = jax.random.normal(kx, (N, C, H, W), dtype=jnp.float32)

    # PyTorch default init is gamma=1, beta=0; perturb so attention weights
    # are non-trivial.
    gamma = 1.0 + 0.1 * jax.random.normal(kg, (C,), dtype=jnp.float32)
    beta = 0.05 * jax.random.normal(kb, (C,), dtype=jnp.float32)

    # References and casts computed up-front (the kernel's output aliasing
    # donates its own intermediate buffer; we avoid any post-call reuse).
    ref = channel_att_ref(x, gamma, beta)
    x16 = x.astype(jnp.bfloat16)
    ref16 = channel_att_ref(x16.astype(jnp.float32), gamma, beta)

    channel_att_j = jax.jit(channel_att)

    # f32 path
    out = jax.block_until_ready(channel_att_j(x, gamma, beta))
    assert out.shape == (N, C, H, W) and out.dtype == x.dtype
    assert jnp.allclose(out, ref, atol=5e-4, rtol=5e-4), "f32 mismatch vs ref"

    # bf16 path: native-dtype tiles, f32 in-register math, bf16 stores.
    out16 = jax.block_until_ready(channel_att_j(x16, gamma, beta))
    assert out16.shape == (N, C, H, W) and out16.dtype == jnp.bfloat16
    assert jnp.allclose(out16.astype(jnp.float32), ref16,
                        atol=3e-2, rtol=3e-2), "bf16 mismatch vs ref"

    print("KERNEL_OK")
</pallas_src>

<mosaic_0001>
module attributes {stable_mosaic.version = 11 : i64} {
  func.func @_stats_kernel(%arg0: i32, %arg1: i32, %arg2: memref<2x4x256xf32, #tpu.memory_space<vmem>>, %arg3: memref<1x4x128xf32, #tpu.memory_space<vmem>>, %arg4: memref<1x4x128xf32, #tpu.memory_space<vmem>>) attributes {dimension_semantics = [#tpu.dimension_semantics<parallel>, #tpu.dimension_semantics<arbitrary>], iteration_bounds = array<i64: 1, 1>, scalar_prefetch = 0 : i64, scratch_operands = 0 : i64, tpu.core_type = #tpu.core_type<tc>, window_params = [{transform_indices = @transform_0, window_bounds = array<i64: 2, 4, 256>}, {transform_indices = @transform_1, window_bounds = array<i64: 1, 4, 128>}, {transform_indices = @transform_2, window_bounds = array<i64: 1, 4, 128>}]} {
    %c0_i32 = arith.constant 0 : i32
    %0 = arith.cmpi eq, %arg1, %c0_i32 : i32
    %1 = arith.extui %0 : i1 to i32
    %c0_i32_0 = arith.constant 0 : i32
    %2 = arith.cmpi ne, %1, %c0_i32_0 : i32
    scf.if %2 {
      %cst_18 = arith.constant 0.000000e+00 : f32
      %27 = vector.broadcast %cst_18 : f32 to vector<4x128xf32>
      %c0_19 = arith.constant 0 : index
      %c0_20 = arith.constant 0 : index
      %c0_21 = arith.constant 0 : index
      %28 = vector.load %arg3[%c0_19, %c0_20, %c0_21] : memref<1x4x128xf32, #tpu.memory_space<vmem>>, vector<1x4x128xf32>
      %29 = vector.shape_cast %28 : vector<1x4x128xf32> to vector<4x128xf32>
      %30 = vector.shape_cast %27 : vector<4x128xf32> to vector<1x4x128xf32>
      tpu.vector_store %arg3[%c0_19, %c0_20, %c0_21], %30 {strides = array<i32>} : memref<1x4x128xf32, #tpu.memory_space<vmem>>, vector<1x4x128xf32>,
      %cst_22 = arith.constant 0.000000e+00 : f32
      %31 = vector.broadcast %cst_22 : f32 to vector<4x128xf32>
      %c0_23 = arith.constant 0 : index
      %c0_24 = arith.constant 0 : index
      %c0_25 = arith.constant 0 : index
      %32 = vector.load %arg4[%c0_23, %c0_24, %c0_25] : memref<1x4x128xf32, #tpu.memory_space<vmem>>, vector<1x4x128xf32>
      %33 = vector.shape_cast %32 : vector<1x4x128xf32> to vector<4x128xf32>
      %34 = vector.shape_cast %31 : vector<4x128xf32> to vector<1x4x128xf32>
      tpu.vector_store %arg4[%c0_23, %c0_24, %c0_25], %34 {strides = array<i32>} : memref<1x4x128xf32, #tpu.memory_space<vmem>>, vector<1x4x128xf32>,
    } else {
    }
    %c0 = arith.constant 0 : index
    %c0_1 = arith.constant 0 : index
    %c0_2 = arith.constant 0 : index
    %3 = vector.load %arg2[%c0, %c0_1, %c0_2] : memref<2x4x256xf32, #tpu.memory_space<vmem>>, vector<2x4x256xf32>
    %4 = arith.mulf %3, %3 : vector<2x4x256xf32>
    %c0_3 = arith.constant 0 : index
    %c0_4 = arith.constant 0 : index
    %c0_5 = arith.constant 0 : index
    %5 = vector.load %arg3[%c0_3, %c0_4, %c0_5] : memref<1x4x128xf32, #tpu.memory_space<vmem>>, vector<1x4x128xf32>
    %6 = vector.shape_cast %5 : vector<1x4x128xf32> to vector<4x128xf32>
    %c0_6 = arith.constant 0 : index
    %c0_7 = arith.constant 0 : index
    %c0_8 = arith.constant 0 : index
    %7 = vector.load %arg4[%c0_6, %c0_7, %c0_8] : memref<1x4x128xf32, #tpu.memory_space<vmem>>, vector<1x4x128xf32>
    %8 = vector.shape_cast %7 : vector<1x4x128xf32> to vector<4x128xf32>
    %9 = vector.extract_strided_slice %3 {offsets = [0, 0, 0], sizes = [2, 4, 128], strides = [1, 1, 1]} : vector<2x4x256xf32> to vector<2x4x128xf32>
    %cst = arith.constant dense<0.000000e+00> : vector<4x128xf32>
    %10 = vector.multi_reduction <add>, %9, %cst [0] : vector<2x4x128xf32> to vector<4x128xf32>
    %11 = arith.addf %6, %10 : vector<4x128xf32>
    %12 = vector.extract_strided_slice %4 {offsets = [0, 0, 0], sizes = [2, 4, 128], strides = [1, 1, 1]} : vector<2x4x256xf32> to vector<2x4x128xf32>
    %cst_9 = arith.constant dense<0.000000e+00> : vector<4x128xf32>
    %13 = vector.multi_reduction <add>, %12, %cst_9 [0] : vector<2x4x128xf32> to vector<4x128xf32>
    %14 = arith.addf %8, %13 : vector<4x128xf32>
    %15 = vector.extract_strided_slice %3 {offsets = [0, 0, 128], sizes = [2, 4, 128], strides = [1, 1, 1]} : vector<2x4x256xf32> to vector<2x4x128xf32>
    %cst_10 = arith.constant dense<0.000000e+00> : vector<4x128xf32>
    %16 = vector.multi_reduction <add>, %15, %cst_10 [0] : vector<2x4x128xf32> to vector<4x128xf32>
    %17 = arith.addf %11, %16 : vector<4x128xf32>
    %18 = vector.extract_strided_slice %4 {offsets = [0, 0, 128], sizes = [2, 4, 128], strides = [1, 1, 1]} : vector<2x4x256xf32> to vector<2x4x128xf32>
    %cst_11 = arith.constant dense<0.000000e+00> : vector<4x128xf32>
    %19 = vector.multi_reduction <add>, %18, %cst_11 [0] : vector<2x4x128xf32> to vector<4x128xf32>
    %20 = arith.addf %14, %19 : vector<4x128xf32>
    %c0_12 = arith.constant 0 : index
    %c0_13 = arith.constant 0 : index
    %c0_14 = arith.constant 0 : index
    %21 = vector.load %arg3[%c0_12, %c0_13, %c0_14] : memref<1x4x128xf32, #tpu.memory_space<vmem>>, vector<1x4x128xf32>
    %22 = vector.shape_cast %21 : vector<1x4x128xf32> to vector<4x128xf32>
    %23 = vector.shape_cast %17 : vector<4x128xf32> to vector<1x4x128xf32>
    tpu.vector_store %arg3[%c0_12, %c0_13, %c0_14], %23 {strides = array<i32>} : memref<1x4x128xf32, #tpu.memory_space<vmem>>, vector<1x4x128xf32>,
    %c0_15 = arith.constant 0 : index
    %c0_16 = arith.constant 0 : index
    %c0_17 = arith.constant 0 : index
    %24 = vector.load %arg4[%c0_15, %c0_16, %c0_17] : memref<1x4x128xf32, #tpu.memory_space<vmem>>, vector<1x4x128xf32>
    %25 = vector.shape_cast %24 : vector<1x4x128xf32> to vector<4x128xf32>
    %26 = vector.shape_cast %20 : vector<4x128xf32> to vector<1x4x128xf32>
    tpu.vector_store %arg4[%c0_15, %c0_16, %c0_17], %26 {strides = array<i32>} : memref<1x4x128xf32, #tpu.memory_space<vmem>>, vector<1x4x128xf32>,
    return
  }
  func.func @transform_0(%arg0: i32, %arg1: i32) -> (i32, i32, i32) {
    %c0_i32 = arith.constant 0 : i32
    %c0_i32_0 = arith.constant 0 : i32
    return %arg0, %c0_i32, %arg1 : i32, i32, i32
  }
  func.func @transform_1(%arg0: i32, %arg1: i32) -> (i32, i32, i32) {
    %c0_i32 = arith.constant 0 : i32
    %c0_i32_0 = arith.constant 0 : i32
    %c0_i32_1 = arith.constant 0 : i32
    return %arg0, %c0_i32, %c0_i32_0 : i32, i32, i32
  }
  func.func @transform_2(%arg0: i32, %arg1: i32) -> (i32, i32, i32) {
    %c0_i32 = arith.constant 0 : i32
    %c0_i32_0 = arith.constant 0 : i32
    %c0_i32_1 = arith.constant 0 : i32
    return %arg0, %c0_i32, %c0_i32_0 : i32, i32, i32
  }
}

module attributes {stable_mosaic.version = 11 : i64} {
  func.func @_apply_kernel(%arg0: i32, %arg1: i32, %arg2: memref<4x2xf32, #tpu.memory_space<vmem>>, %arg3: memref<2x4x256xf32, #tpu.memory_space<vmem>>, %arg4: memref<2x4x256xf32, #tpu.memory_space<vmem>>) attributes {dimension_semantics = [#tpu.dimension_semantics<parallel>, #tpu.dimension_semantics<parallel>], iteration_bounds = array<i64: 1, 1>, scalar_prefetch = 0 : i64, scratch_operands = 0 : i64, tpu.core_type = #tpu.core_type<tc>, window_params = [{pipeline_mode = #tpu.pipeline_mode<synchronous>, transform_indices = @transform_0, window_bounds = array<i64: 4, 2>}, {transform_indices = @transform_1, window_bounds = array<i64: 2, 4, 256>}, {transform_indices = @transform_2, window_bounds = array<i64: 2, 4, 256>}]} {
    %c0 = arith.constant 0 : index
    %c0_0 = arith.constant 0 : index
    %0 = vector.load %arg2[%c0, %c0_0] : memref<4x2xf32, #tpu.memory_space<vmem>>, vector<4x2xf32>
    %1 = vector.extract_strided_slice %0 {offsets = [0, 0], sizes = [4, 1], strides = [1, 1]} : vector<4x2xf32> to vector<4x1xf32>
    %2 = vector.shape_cast %1 : vector<4x1xf32> to vector<1x4x1xf32>
    %3 = vector.extract_strided_slice %0 {offsets = [0, 1], sizes = [4, 1], strides = [1, 1]} : vector<4x2xf32> to vector<4x1xf32>
    %4 = vector.shape_cast %3 : vector<4x1xf32> to vector<1x4x1xf32>
    %c0_1 = arith.constant 0 : index
    %c0_2 = arith.constant 0 : index
    %c0_3 = arith.constant 0 : index
    %5 = vector.load %arg3[%c0_1, %c0_2, %c0_3] : memref<2x4x256xf32, #tpu.memory_space<vmem>>, vector<2x4x256xf32>
    %6 = vector.broadcast %2 : vector<1x4x1xf32> to vector<2x4x256xf32>
    %7 = arith.mulf %6, %5 : vector<2x4x256xf32>
    %8 = vector.broadcast %4 : vector<1x4x1xf32> to vector<2x4x256xf32>
    %9 = arith.addf %7, %8 : vector<2x4x256xf32>
    %cst = arith.constant -3.000000e+01 : f32
    %10 = vector.broadcast %cst : f32 to vector<2x4x256xf32>
    %11 = arith.maximumf %9, %10 : vector<2x4x256xf32>
    %cst_4 = arith.constant 0.000000e+00 : f32
    %12 = vector.broadcast %cst_4 : f32 to vector<2x4x256xf32>
    %13 = arith.subf %12, %11 : vector<2x4x256xf32>
    %14 = math.exp %13 : vector<2x4x256xf32>
    %cst_5 = arith.constant 1.000000e+00 : f32
    %15 = vector.broadcast %cst_5 : f32 to vector<2x4x256xf32>
    %16 = arith.addf %15, %14 : vector<2x4x256xf32>
    %17 = tpu.reciprocal %16 {approx = true} : vector<2x4x256xf32> -> vector<2x4x256xf32>
    %18 = arith.mulf %16, %17 : vector<2x4x256xf32>
    %cst_6 = arith.constant 2.000000e+00 : f32
    %19 = vector.broadcast %cst_6 : f32 to vector<2x4x256xf32>
    %20 = arith.subf %19, %18 : vector<2x4x256xf32>
    %21 = arith.mulf %17, %20 : vector<2x4x256xf32>
    %22 = arith.mulf %5, %21 : vector<2x4x256xf32>
    %c0_7 = arith.constant 0 : index
    %c0_8 = arith.constant 0 : index
    %c0_9 = arith.constant 0 : index
    %23 = vector.load %arg4[%c0_7, %c0_8, %c0_9] : memref<2x4x256xf32, #tpu.memory_space<vmem>>, vector<2x4x256xf32>
    tpu.vector_store %arg4[%c0_7, %c0_8, %c0_9], %22 {strides = array<i32>} : memref<2x4x256xf32, #tpu.memory_space<vmem>>, vector<2x4x256xf32>,
    return
  }
  func.func @transform_0(%arg0: i32, %arg1: i32) -> (i32, i32) {
    %c0_i32 = arith.constant 0 : i32
    %c0_i32_0 = arith.constant 0 : i32
    %c0_i32_1 = arith.constant 0 : i32
    return %c0_i32, %c0_i32_0 : i32, i32
  }
  func.func @transform_1(%arg0: i32, %arg1: i32) -> (i32, i32, i32) {
    %c0_i32 = arith.constant 0 : i32
    %c0_i32_0 = arith.constant 0 : i32
    return %arg0, %c0_i32, %arg1 : i32, i32, i32
  }
  func.func @transform_2(%arg0: i32, %arg1: i32) -> (i32, i32, i32) {
    %c0_i32 = arith.constant 0 : i32
    %c0_i32_0 = arith.constant 0 : i32
    return %arg0, %c0_i32, %arg1 : i32, i32, i32
  }
}

</mosaic_0001>

<llo_original>
// kernel: channel_att.2
$region0: #{channel_att.2}
  #allocation0 [shape = 'u32[]', space=smem, size = 0x4, offset = 0x4, fixed_abs, tag = 'smem constant byte address 0x4 - core index']
  #allocation1 [shape = 'u32[144,128]{1,0:T(1,128)}', space=vmem, size = 0x12000, scoped, tag = 'internal scratch']
  %s0 = inlined_call_operand.vmem [shape: f32[2,4,256], index: 0, kind: input, shape index: {}]
  %s1 = inlined_call_operand.vmem [shape: f32[1,4,128], index: 1, kind: output, shape index: {0}]
  %s2 = inlined_call_operand.vmem [shape: f32[1,4,128], index: 2, kind: output, shape index: {1}]
  %3 = xla_tuple %s1, %s2
  %s4 = sld [smem:[#allocation0]]
  $region26: #{channel_att.2} parent=0
    _
  %s6 = ssub.s32 1, %s4
  %s7 = scalar_select 0, %s6, %s4
  // Predicated region
  $region2: #{channel_att.2} parent=0 // pred_check
    _
  $region3: #{channel_att.2} parent=0 // pred_check_branch
    %9 = sbr.rel (0) target = $region5
  $region4: #{channel_att.2} parent=0 // pred_region
    _
  $region5: #{channel_att.2} parent=0 // pred_fallthru
    _
  %p10 = scmp.eq.s32.totalorder 0, 0
  // Predicated region
  $region6: #{channel_att.2} parent=0 // pred_check
    %p11 = pneg %p10
  $region7: #{channel_att.2} parent=0 // pred_check_branch
    %13 = sbr.rel (%p11) target = $region9
  $region8: #{channel_att.2} parent=0 // pred_region
    %14 = vst [vmem:[%s1] sm:$0xf] 0.0
    %15 = vst [vmem:[%s2] sm:$0xf] 0.0
  $region9: #{channel_att.2} parent=0 // pred_fallthru
    _
  %v16 = vld [vmem:[%s0] sm:$0xff]
  %v17 = vld [vmem:[%s0 + $0x8] sm:$0xff]
  %v18 = vmul.f32 %v16, %v16
  %v19 = vmul.f32 %v17, %v17
  %v20 = vld [vmem:[%s1] sm:$0xf]
  %v21 = vld [vmem:[%s2] sm:$0xf]
  %vm22 = vcmask 1043456
  %v23 = vsel %vm22, %v16, 0.0
  %v24 = vsel %vm22, %v17, 0.0
  %v25 = vadd.f32 %v23, %v24
  %v26 = vadd.f32 %v20, %v25
  %v27 = vsel %vm22, %v18, 0.0
  %v28 = vsel %vm22, %v19, 0.0
  %v29 = vadd.f32 %v27, %v28
  %v30 = vadd.f32 %v21, %v29
  %v33 = vcombine.high %v16, %v16
  %v34 = vcombine.high %v17, %v17
  %v37 = vsel %vm22, %v33, 0.0
  %v38 = vsel %vm22, %v34, 0.0
  %v39 = vadd.f32 %v37, %v38
  %v40 = vadd.f32 %v26, %v39
  %v43 = vcombine.high %v18, %v18
  %v44 = vcombine.high %v19, %v19
  %v47 = vsel %vm22, %v43, 0.0
  %v48 = vsel %vm22, %v44, 0.0
  %v49 = vadd.f32 %v47, %v48
  %v50 = vadd.f32 %v30, %v49
  %51 = vst [vmem:[%s1] sm:$0xf] %v40
  %52 = vst [vmem:[%s2] sm:$0xf] %v50
  // Predicated region
  $region10: #{channel_att.2} parent=0 // pred_check
    _
  $region11: #{channel_att.2} parent=0 // pred_check_branch
    %54 = sbr.rel (0) target = $region13
  $region12: #{channel_att.2} parent=0 // pred_region
    _
  $region13: #{channel_att.2} parent=0 // pred_fallthru
    _
  // Predicated region
  $region14: #{channel_att.2} parent=0 // pred_check
    _
  $region15: #{channel_att.2} parent=0 // pred_check_branch
    %56 = sbr.rel (0) target = $region17
  $region16: #{channel_att.2} parent=0 // pred_region
    _
  $region17: #{channel_att.2} parent=0 // pred_fallthru
    _
  // Predicated region
  $region18: #{channel_att.2} parent=0 // pred_check
    _
  $region19: #{channel_att.2} parent=0 // pred_check_branch
    %58 = sbr.rel (0) target = $region21
  $region20: #{channel_att.2} parent=0 // pred_region
    _
  $region21: #{channel_att.2} parent=0 // pred_fallthru
    _
  // Predicated region
  $region22: #{channel_att.2} parent=0 // pred_check
    _
  $region23: #{channel_att.2} parent=0 // pred_check_branch
    %60 = sbr.rel (0) target = $region25
  $region24: #{channel_att.2} parent=0 // pred_region
    _
  $region25: #{channel_att.2} parent=0 // pred_fallthru
    _

// kernel: channel_att.3
$region0: #{channel_att.3}
  #allocation0 [shape = 'u32[]', space=smem, size = 0x4, offset = 0x4, fixed_abs, tag = 'smem constant byte address 0x4 - core index']
  #allocation1 [shape = 'u32[144,128]{1,0:T(1,128)}', space=vmem, size = 0x12000, scoped, tag = 'internal scratch']
  %s0 = inlined_call_operand.vmem [shape: f32[4,2], index: 0, kind: input, shape index: {}]
  %s1 = inlined_call_operand.vmem [shape: f32[2,4,256], index: 1, kind: input, shape index: {}, may-alias: {1,2}]
  %s2 = inlined_call_operand.vmem [shape: f32[2,4,256], index: 2, kind: output, shape index: {}, may-alias: {1,2}]
  %s3 = sld [smem:[#allocation0]]
  $region18: #{channel_att.3} parent=0
    _
  %s5 = ssub.s32 1, %s3
  %s6 = scalar_select 0, %s5, %s3
  // Predicated region
  $region2: #{channel_att.3} parent=0 // pred_check
    _
  $region3: #{channel_att.3} parent=0 // pred_check_branch
    %8 = sbr.rel (0) target = $region5
  $region4: #{channel_att.3} parent=0 // pred_region
    _
  $region5: #{channel_att.3} parent=0 // pred_fallthru
    _
  // Predicated region
  $region6: #{channel_att.3} parent=0 // pred_check
    _
  $region7: #{channel_att.3} parent=0 // pred_check_branch
    %10 = sbr.rel (0) target = $region9
  $region8: #{channel_att.3} parent=0 // pred_region
    _
  $region9: #{channel_att.3} parent=0 // pred_fallthru
    _
  %v11 = vld [vmem:[%s0] sm:$0xf]
  %v12 = vld [vmem:[%s1] sm:$0xff]
  %v13 = vld [vmem:[%s1 + $0x8] sm:$0xff]
  %15 = vset.pattern.permute.xlu0 0
  %16 = vperm.xlu0 %15, %v11
  %v17 = vpop.permute.xlu0 %16
  %v21 = vcombine.high %v12, %v12
  %v22 = vcombine.high %v13, %v13
  %v25 = vmul.f32 %v17, %v12
  %v26 = vmul.f32 %v17, %v21
  %v27 = vmul.f32 %v17, %v13
  %v28 = vmul.f32 %v17, %v22
  %29 = vset.pattern.permute.xlu0 1
  %30 = vperm.xlu0 %29, %v11
  %v31 = vpop.permute.xlu0 %30
  %v33 = vadd.f32 %v25, %v31
  %v34 = vadd.f32 %v26, %v31
  %v35 = vadd.f32 %v27, %v31
  %v36 = vadd.f32 %v28, %v31
  %v37 = vmax.f32 %v33, -30.0
  %v38 = vmax.f32 %v34, -30.0
  %v39 = vmax.f32 %v35, -30.0
  %v40 = vmax.f32 %v36, -30.0
  %v41 = vsub.f32 0.0, %v37
  %v42 = vsub.f32 0.0, %v38
  %v43 = vsub.f32 0.0, %v39
  %v44 = vsub.f32 0.0, %v40
  %v45 = vmul.f32 %v41, 1.442695
  %v46 = vpow.pop %v45
  %v47 = vmul.f32 %v42, 1.442695
  %v48 = vpow.pop %v47
  %v49 = vmul.f32 %v43, 1.442695
  %v50 = vpow.pop %v49
  %v51 = vmul.f32 %v44, 1.442695
  %v52 = vpow.pop %v51
  %v53 = vadd.f32 %v46, 1.0
  %v54 = vadd.f32 %v48, 1.0
  %v55 = vadd.f32 %v50, 1.0
  %v56 = vadd.f32 %v52, 1.0
  %v57 = vrcp.pop %v53
  %v58 = vrcp.pop %v54
  %v59 = vrcp.pop %v55
  %v60 = vrcp.pop %v56
  %v61 = vmul.f32 %v53, %v57
  %v62 = vmul.f32 %v54, %v58
  %v63 = vmul.f32 %v55, %v59
  %v64 = vmul.f32 %v56, %v60
  %v65 = vsub.f32 2.0, %v61
  %v66 = vsub.f32 2.0, %v62
  %v67 = vsub.f32 2.0, %v63
  %v68 = vsub.f32 2.0, %v64
  %v69 = vmul.f32 %v57, %v65
  %v70 = vmul.f32 %v58, %v66
  %v71 = vmul.f32 %v59, %v67
  %v72 = vmul.f32 %v60, %v68
  %v77 = vcombine.low %v69, %v70
  %v78 = vcombine.low %v71, %v72
  %v81 = vmul.f32 %v12, %v77
  %v82 = vmul.f32 %v13, %v78
  %83 = vst [vmem:[%s2] sm:$0xff] %v81
  %84 = vst [vmem:[%s2 + $0x8] sm:$0xff] %v82
  // Predicated region
  $region10: #{channel_att.3} parent=0 // pred_check
    _
  $region11: #{channel_att.3} parent=0 // pred_check_branch
    %86 = sbr.rel (0) target = $region13
  $region12: #{channel_att.3} parent=0 // pred_region
    _
  $region13: #{channel_att.3} parent=0 // pred_fallthru
    _
  // Predicated region
  $region14: #{channel_att.3} parent=0 // pred_check
    _
  $region15: #{channel_att.3} parent=0 // pred_check_branch
    %88 = sbr.rel (0) target = $region17
  $region16: #{channel_att.3} parent=0 // pred_region
    _
  $region17: #{channel_att.3} parent=0 // pred_fallthru
    _

</llo_original>
